<compile_context>
chip_gen: v6e
topology: v6e:2x2x1
jax: 0.10.0
libtpu: 0.0.40
codegen_flags: <defaults>
</compile_context>

<pallas_src>
import jax
import jax.numpy as jnp
from jax.experimental import pallas as pl
from jax.experimental.pallas import tpu as pltpu

# ---- model dims (small, consistent with the module) -------------------------
B, S, EMB_DIM = 2, 8, 32
GRID_VOCAB, ROAD_VOCAB = 64, 32
TOKENS = ("gps", "grid", "roadnet")
HEAD_DIMS = {"gps": 2, "grid": GRID_VOCAB, "roadnet": ROAD_VOCAB}

LANE = 128      # vreg lane width
SUBLANE = 8     # vreg sublane count (f32)


def _round_up(n, m):
    return (n + m - 1) // m * m


def multi_head_kernel(x_ref, w_ref, b_ref, out_ref):
    # Single wide MXU push: (rows, EMB) @ (EMB, N_pad) + bias broadcast.
    out_ref[...] = (
        jnp.dot(x_ref[...], w_ref[...], preferred_element_type=jnp.float32)
        + b_ref[...]
    )


def multi_token_task_head(x, params):
    """x: (B, S, EMB_DIM) float32 -> {token: (B, S, head_dim) float32}."""
    b, s, e = x.shape
    rows = b * s
    rows_pad = _round_up(rows, SUBLANE)

    # Fold batch + sequence into the row (sublane) dimension.
    x2 = x.reshape(rows, e)
    if rows_pad != rows:
        x2 = jnp.pad(x2, ((0, rows_pad - rows), (0, 0)))

    # Fuse every task head into one lane-padded weight/bias slab.
    # NOTE: weights are stored (in, out) = nn.Linear.weight.T; transpose if
    # loading from a real PyTorch state_dict.
    total = sum(HEAD_DIMS[t] for t in TOKENS)
    n_pad = _round_up(total, LANE)
    w_all = jnp.concatenate([params[t]["w"] for t in TOKENS], axis=1)  # (E, total)
    b_all = jnp.concatenate([params[t]["b"] for t in TOKENS], axis=1)  # (1, total)
    w_all = jnp.pad(w_all, ((0, 0), (0, n_pad - total)))
    b_all = jnp.pad(b_all, ((0, 0), (0, n_pad - total)))

    cost = pl.CostEstimate(
        flops=2 * rows_pad * e * n_pad,
        transcendentals=0,
        bytes_accessed=4 * (rows_pad * e + e * n_pad + n_pad + rows_pad * n_pad),
    )

    out = pl.pallas_call(
        multi_head_kernel,
        out_shape=jax.ShapeDtypeStruct((rows_pad, n_pad), jnp.float32),
        grid=(1,),
        in_specs=[
            pl.BlockSpec((rows_pad, e), lambda i: (0, 0)),   # activations
            pl.BlockSpec((e, n_pad), lambda i: (0, 0)),      # fused head weights
            pl.BlockSpec((1, n_pad), lambda i: (0, 0)),      # fused head biases
        ],
        out_specs=pl.BlockSpec((rows_pad, n_pad), lambda i: (0, 0)),
        compiler_params=pltpu.CompilerParams(
            dimension_semantics=("arbitrary",)),
        cost_estimate=cost,
    )(x2, w_all, b_all)

    # Static slices back into the per-token dict (same structure as PyTorch).
    result = {}
    off = 0
    for t in TOKENS:
        d = HEAD_DIMS[t]
        result[t] = out[:rows, off:off + d].reshape(b, s, d)
        off += d
    return result


# ---- deterministic parameter / input construction ---------------------------
def init_params(key):
    params = {}
    ks = jax.random.split(key, len(TOKENS))
    bound = 1.0 / jnp.sqrt(jnp.float32(EMB_DIM))
    for k, t in zip(ks, TOKENS):
        d = HEAD_DIMS[t]
        kw, kb = jax.random.split(k)
        # (in, out) layout so the kernel computes y = x @ W + b.
        w = jax.random.uniform(kw, (EMB_DIM, d), jnp.float32, -bound, bound)
        bb = jax.random.uniform(kb, (1, d), jnp.float32, -bound, bound)
        params[t] = {"w": w, "b": bb}
    return params


if __name__ == "__main__":
    key = jax.random.PRNGKey(0)
    k_x, k_p = jax.random.split(key)

    x = jax.random.normal(k_x, (B, S, EMB_DIM), jnp.float32)
    params = init_params(k_p)

    out = multi_token_task_head(x, params)
    out = jax.block_until_ready(out)

    # Pure-JAX reference check of the fused kernel.
    x_flat = x.reshape(-1, EMB_DIM)
    for t in TOKENS:
        ref = (x_flat @ params[t]["w"] + params[t]["b"]).reshape(B, S, HEAD_DIMS[t])
        assert out[t].shape == (B, S, HEAD_DIMS[t])
        assert jnp.all(jnp.isfinite(out[t]))
        assert jnp.allclose(out[t], ref, atol=1e-5, rtol=1e-5)

    print("KERNEL_OK")
</pallas_src>

<mosaic_0001>
module attributes {stable_mosaic.version = 11 : i64} {
  func.func @multi_head_kernel(%arg0: i32, %arg1: memref<16x32xf32, #tpu.memory_space<vmem>>, %arg2: memref<32x128xf32, #tpu.memory_space<vmem>>, %arg3: memref<1x128xf32, #tpu.memory_space<vmem>>, %arg4: memref<16x128xf32, #tpu.memory_space<vmem>>) attributes {dimension_semantics = [#tpu.dimension_semantics<arbitrary>], iteration_bounds = array<i64: 1>, scalar_prefetch = 0 : i64, scratch_operands = 0 : i64, tpu.core_type = #tpu.core_type<tc>, window_params = [{pipeline_mode = #tpu.pipeline_mode<synchronous>, transform_indices = @transform_0, window_bounds = array<i64: 16, 32>}, {pipeline_mode = #tpu.pipeline_mode<synchronous>, transform_indices = @transform_1, window_bounds = array<i64: 32, 128>}, {pipeline_mode = #tpu.pipeline_mode<synchronous>, transform_indices = @transform_2, window_bounds = array<i64: 1, 128>}, {pipeline_mode = #tpu.pipeline_mode<synchronous>, transform_indices = @transform_3, window_bounds = array<i64: 16, 128>}]} {
    %c0 = arith.constant 0 : index
    %c0_0 = arith.constant 0 : index
    %0 = vector.load %arg1[%c0, %c0_0] : memref<16x32xf32, #tpu.memory_space<vmem>>, vector<16x32xf32>
    %c0_1 = arith.constant 0 : index
    %c0_2 = arith.constant 0 : index
    %1 = vector.load %arg2[%c0_1, %c0_2] : memref<32x128xf32, #tpu.memory_space<vmem>>, vector<32x128xf32>
    %cst = arith.constant dense<0.000000e+00> : vector<16x128xf32>
    %2 = tpu.matmul %0, %1, %cst {dimension_numbers = #tpu.dot_dimension_numbers<[1], [0], [0], [1], [0, 0, 1, 1], [], []>} : vector<16x32xf32>, vector<32x128xf32>, vector<16x128xf32> -> vector<16x128xf32>
    %c0_3 = arith.constant 0 : index
    %c0_4 = arith.constant 0 : index
    %3 = vector.load %arg3[%c0_3, %c0_4] : memref<1x128xf32, #tpu.memory_space<vmem>>, vector<1x128xf32>
    %4 = vector.broadcast %3 : vector<1x128xf32> to vector<16x128xf32>
    %5 = arith.addf %2, %4 : vector<16x128xf32>
    %c0_5 = arith.constant 0 : index
    %c0_6 = arith.constant 0 : index
    %6 = vector.load %arg4[%c0_5, %c0_6] : memref<16x128xf32, #tpu.memory_space<vmem>>, vector<16x128xf32>
    tpu.vector_store %arg4[%c0_5, %c0_6], %5 {strides = array<i32>} : memref<16x128xf32, #tpu.memory_space<vmem>>, vector<16x128xf32>,
    return
  }
  func.func @transform_0(%arg0: i32) -> (i32, i32) {
    %c0_i32 = arith.constant 0 : i32
    %c0_i32_0 = arith.constant 0 : i32
    %c0_i32_1 = arith.constant 0 : i32
    return %c0_i32, %c0_i32_0 : i32, i32
  }
  func.func @transform_1(%arg0: i32) -> (i32, i32) {
    %c0_i32 = arith.constant 0 : i32
    %c0_i32_0 = arith.constant 0 : i32
    %c0_i32_1 = arith.constant 0 : i32
    return %c0_i32, %c0_i32_0 : i32, i32
  }
  func.func @transform_2(%arg0: i32) -> (i32, i32) {
    %c0_i32 = arith.constant 0 : i32
    %c0_i32_0 = arith.constant 0 : i32
    %c0_i32_1 = arith.constant 0 : i32
    return %c0_i32, %c0_i32_0 : i32, i32
  }
  func.func @transform_3(%arg0: i32) -> (i32, i32) {
    %c0_i32 = arith.constant 0 : i32
    %c0_i32_0 = arith.constant 0 : i32
    %c0_i32_1 = arith.constant 0 : i32
    return %c0_i32, %c0_i32_0 : i32, i32
  }
}

</mosaic_0001>

<llo_original>
// kernel: tpu_custom_call.1
$region0: #{tpu_custom_call.1}
  #allocation0 [shape = 'u32[]', space=smem, size = 0x4, offset = 0x4, fixed_abs, tag = 'smem constant byte address 0x4 - core index']
  #allocation1 [shape = 'u32[144,128]{1,0:T(1,128)}', space=vmem, size = 0x12000, scoped, tag = 'internal scratch']
  %s0 = inlined_call_operand.hbm [shape: f32[16,32], index: 0, kind: input, shape index: {}]
  %s1 = inlined_call_operand.hbm [shape: f32[32,128], index: 1, kind: input, shape index: {}]
  %s2 = inlined_call_operand.vmem [shape: f32[1,128], index: 2, kind: input, shape index: {}]
  %s3 = inlined_call_operand.hbm [shape: f32[16,128], index: 3, kind: output, shape index: {}]
  %s4 = sld [smem:[#allocation0]]
  $region30: #{tpu_custom_call.1} parent=0
    _
  %s6 = ssub.s32 1, %s4
  %s7 = scalar_select 0, %s6, %s4
  $region1: #{tpu_custom_call.1} parent=0
    #allocation2 [shape = 'u8[8192]{0}', space=vmem, size = 0x2000, scoped, tag = 'input window, operand 0, single buffered']
    #allocation3 [shape = 's32[1]{0}', space=sflag, size = 0x4, scoped, tag = 'scoped memory for tpu_custom_call.1']
    #allocation4 [shape = 's32[1]{0}', space=sflag, size = 0x4, scoped, tag = 'scoped memory for tpu_custom_call.1']
    #allocation5 [shape = 'u8[16384]{0}', space=vmem, size = 0x4000, scoped, tag = 'input window, operand 1, single buffered']
    #allocation6 [shape = 's32[1]{0}', space=sflag, size = 0x4, scoped, tag = 'scoped memory for tpu_custom_call.1']
    #allocation7 [shape = 'u8[8192]{0}', space=vmem, size = 0x2000, scoped, tag = 'output window, operand 0, single buffered']
    %8 = vsyncpa [#allocation3], 0
    %9 = vsyncpa [#allocation6], 0
    %10 = vsyncpa [#allocation4], 0
    // Predicated region
    $region2: #{tpu_custom_call.1} parent=1 // pred_check
      _
    $region3: #{tpu_custom_call.1} parent=1 // pred_check_branch
      %12 = sbr.rel (0) target = $region5
    $region4: #{tpu_custom_call.1} parent=1 // pred_region
      %s14 = ssub.s32 256, 256
      %15 = vsyncadd [#allocation3], %s14
      %s16 = sshll.u32 [#allocation2], 4
      %s17 = int_to_ptr.vmem [resolvable:$true] %s16
      %22 = dma.hbm_to_vmem [thread:$0]  %s0, 256, %s17, [#allocation3], 128, 128, 8
    $region5: #{tpu_custom_call.1} parent=1 // pred_fallthru
      _
    // Predicated region
    $region6: #{tpu_custom_call.1} parent=1 // pred_check
      _
    $region7: #{tpu_custom_call.1} parent=1 // pred_check_branch
      %24 = sbr.rel (0) target = $region9
    $region8: #{tpu_custom_call.1} parent=1 // pred_region
      %s26 = ssub.s32 512, 512
      %27 = vsyncadd [#allocation6], %s26
      %s28 = sshll.u32 [#allocation5], 4
      %s29 = int_to_ptr.vmem [resolvable:$true] %s28
      %34 = dma.hbm_to_vmem [thread:$0]  %s1, 512, %s29, [#allocation6], 128, 128, 8
    $region9: #{tpu_custom_call.1} parent=1 // pred_fallthru
      _
    // Predicated region
    $region10: #{tpu_custom_call.1} parent=1 // pred_check
      _
    $region11: #{tpu_custom_call.1} parent=1 // pred_check_branch
      %36 = sbr.rel (0) target = $region13
    $region12: #{tpu_custom_call.1} parent=1 // pred_region
      _
    $region13: #{tpu_custom_call.1} parent=1 // pred_fallthru
      _
    // Predicated region
    $region14: #{tpu_custom_call.1} parent=1 // pred_check
      _
    $region15: #{tpu_custom_call.1} parent=1 // pred_check_branch
      %38 = sbr.rel (0) target = $region17
    $region16: #{tpu_custom_call.1} parent=1 // pred_region
      %39 = dma.done [#allocation3], 256
    $region17: #{tpu_custom_call.1} parent=1 // pred_fallthru
      _
    // Predicated region
    $region18: #{tpu_custom_call.1} parent=1 // pred_check
      _
    $region19: #{tpu_custom_call.1} parent=1 // pred_check_branch
      %41 = sbr.rel (0) target = $region21
    $region20: #{tpu_custom_call.1} parent=1 // pred_region
      %42 = dma.done [#allocation6], 512
    $region21: #{tpu_custom_call.1} parent=1 // pred_fallthru
      _
    %v43 = vld [vmem:[#allocation2] sm:$0xff]
    %v44 = vld [vmem:[#allocation2 + $0x8] sm:$0xff]
    %v45 = vld [vmem:[#allocation5] sm:$0xff]
    %v46 = vld [vmem:[#allocation5 + $0x8] sm:$0xff]
    %v47 = vld [vmem:[#allocation5 + $0x10] sm:$0xff]
    %v48 = vld [vmem:[#allocation5 + $0x18] sm:$0xff]
    %v49 = vld [vmem:[%s2] sm:$0x1]
    %v51 = vlaneseq
    %v52 = vshrl.u32 %v51, 7
    %v53 = vsub.s32 0, %v52
    %v54 = vrot.slane %v49, %v53
    %vm56 = vcmask 261120
    %v58 = vsel %vm56, %v43, 0
    %v61 = vsel %vm56, %v44, 0
    %63 = vmatprep.subr.mxu0 0.0
    %64 = vmatpush1.msra.mxu0 0.0
    %65 = vmatprep.subr.mxu0 0.0
    %66 = vmatpush1.msra.mxu0 0.0
    %67 = vmatprep.subr.mxu0 0.0
    %68 = vmatpush1.msra.mxu0 0.0
    %69 = vmatprep.subr.mxu0 0.0
    %70 = vmatpush1.msra.mxu0 0.0
    %71 = vmatprep.subr.mxu0 0.0
    %72 = vmatpush1.msra.mxu0 0.0
    %73 = vmatprep.subr.mxu0 0.0
    %74 = vmatpush1.msra.mxu0 0.0
    %75 = vmatprep.subr.mxu0 0.0
    %76 = vmatpush1.msra.mxu0 0.0
    %77 = vmatprep.subr.mxu0 0.0
    %78 = vmatpush1.msra.mxu0 0.0
    %79 = vmatprep.subr.mxu0 0.0
    %80 = vmatpush1.msra.mxu0 0.0
    %81 = vmatprep.subr.mxu0 0.0
    %82 = vmatpush1.msra.mxu0 0.0
    %83 = vmatprep.subr.mxu0 0.0
    %84 = vmatpush1.msra.mxu0 0.0
    %85 = vmatprep.subr.mxu0 0.0
    %86 = vmatpush1.msra.mxu0 0.0
    %87 = vmatprep.subr.mxu0 0.0
    %88 = vmatpush1.msra.mxu0 %v48
    %89 = vmatprep.subr.mxu0 0.0
    %90 = vmatpush1.msra.mxu0 %v47
    %91 = vmatprep.subr.mxu0 0.0
    %92 = vmatpush1.msra.mxu0 %v46
    %93 = vmatprep.subr.mxu0 0.0
    %94 = vmatpush1.msra.mxu0 %v45
    %95 = vmatprep.subr.mxu0 0.0
    %96 = vmatpush2.msra.mxu0 0.0
    %97 = vmatprep.subr.mxu0 0.0
    %98 = vmatpush2.msra.mxu0 0.0
    %99 = vmatprep.subr.mxu0 0.0
    %100 = vmatpush2.msra.mxu0 0.0
    %101 = vmatprep.subr.mxu0 0.0
    %102 = vmatpush2.msra.mxu0 0.0
    %103 = vmatprep.subr.mxu0 0.0
    %104 = vmatpush2.msra.mxu0 0.0
    %105 = vmatprep.subr.mxu0 0.0
    %106 = vmatpush2.msra.mxu0 0.0
    %107 = vmatprep.subr.mxu0 0.0
    %108 = vmatpush2.msra.mxu0 0.0
    %109 = vmatprep.subr.mxu0 0.0
    %110 = vmatpush2.msra.mxu0 0.0
    %111 = vmatprep.subr.mxu0 0.0
    %112 = vmatpush2.msra.mxu0 0.0
    %113 = vmatprep.subr.mxu0 0.0
    %114 = vmatpush2.msra.mxu0 0.0
    %115 = vmatprep.subr.mxu0 0.0
    %116 = vmatpush2.msra.mxu0 0.0
    %117 = vmatprep.subr.mxu0 0.0
    %118 = vmatpush2.msra.mxu0 0.0
    %119 = vmatprep.subr.mxu0 0.0
    %120 = vmatpush2.msra.mxu0 0.0
    %121 = vmatprep.subr.mxu0 0.0
    %122 = vmatpush2.msra.mxu0 0.0
    %123 = vmatprep.subr.mxu0 0.0
    %124 = vmatpush2.msra.mxu0 0.0
    %125 = vmatprep.subr.mxu0 0.0
    %126 = vmatpush2.msra.mxu0 0.0
    %127 = vmatprep.mubr.f32.mxu0 0.0
    %128 = vmatmul.mubr.f32.gmra.mxu0 %v58
    %v129 = vpop.f32.mrf.mxu0
    %v130 = vadd.f32 %v54, %v129
    %v131 = vpop.f32.mrf.mxu0
    %132 = vmatprep.mubr.f32.mxu0 0.0
    %133 = vmatmul.mubr.f32.gmra.mxu0 %v61
    %v134 = vpop.f32.mrf.mxu0
    %v135 = vadd.f32 %v54, %v134
    %v136 = vpop.f32.mrf.mxu0
    %137 = vdwg.mxu0
    %138 = vst [vmem:[#allocation7] sm:$0xff] %v130
    %139 = vst [vmem:[#allocation7 + $0x8] sm:$0xff] %v135
    // Predicated region
    $region22: #{tpu_custom_call.1} parent=1 // pred_check
      _
    $region23: #{tpu_custom_call.1} parent=1 // pred_check_branch
      %141 = sbr.rel (0) target = $region25
    $region24: #{tpu_custom_call.1} parent=1 // pred_region
      %s143 = ssub.s32 256, 256
      %144 = vsyncadd [#allocation4], %s143
      %s145 = sshll.u32 [#allocation7], 4
      %s146 = int_to_ptr.vmem [resolvable:$true] %s145
      %151 = dma.vmem_to_hbm [thread:$0]  %s146, 256, %s3, [#allocation4], 128, 128, 8
    $region25: #{tpu_custom_call.1} parent=1 // pred_fallthru
      _
    // Predicated region
    $region26: #{tpu_custom_call.1} parent=1 // pred_check
      _
    $region27: #{tpu_custom_call.1} parent=1 // pred_check_branch
      %153 = sbr.rel (0) target = $region29
    $region28: #{tpu_custom_call.1} parent=1 // pred_region
      %154 = dma.done [#allocation4], 256
    $region29: #{tpu_custom_call.1} parent=1 // pred_fallthru
      _
    %155 = vsyncpa [#allocation3], 1
    %156 = vsyncpa [#allocation6], 1
    %157 = vsyncpa [#allocation4], 1

</llo_original>
